<compile_context>
chip_gen: v7x
topology: tpu7x:2x2x1
jax: 0.10.0
libtpu: 0.0.40
codegen_flags: <defaults>
</compile_context>

<pallas_src>
import jax
import jax.numpy as jnp
from jax.experimental import pallas as pl
from jax.experimental.pallas import tpu as pltpu

VOC = 128   # voc_size (drug vocabulary)
EMB = 64    # emb_dim

_VMEM = pl.BlockSpec(memory_space=pltpu.MemorySpace.VMEM)


# =============================================================================
# Fused kernel: adj@W1 + b1 -> ReLU -> (eval dropout = identity) -> @W2 -> adj@(.) + b2
# =============================================================================
def gcn_kernel(adj_ref, w1_ref, b1_ref, w2_ref, b2_ref, out_ref):
    adj = adj_ref[...]                                            # (V, V) bf16

    # gcn1: support = I @ W1 = W1 ; h1 = adj @ support + b1  (bias row broadcast)
    h1 = (jnp.dot(adj, w1_ref[...], preferred_element_type=jnp.float32)
          + b1_ref[...])                                          # (V, E) f32
    h1 = jnp.maximum(h1, 0.0)                                     # ReLU; dropout eval no-op

    # gcn2: support = h1 @ W2 ; out = adj @ support + b2
    s = jnp.dot(h1.astype(jnp.bfloat16), w2_ref[...],
                preferred_element_type=jnp.float32)               # (V, E) f32
    out_ref[...] = (jnp.dot(adj, s.astype(jnp.bfloat16),
                            preferred_element_type=jnp.float32)
                    + b2_ref[...])                                # (V, E) f32


def gcn_forward(adj_n, w1, b1, w2, b2):
    """Run the fused GCN forward. adj_n is the row-normalized (adj + I)."""
    V, E = w1.shape
    return pl.pallas_call(
        gcn_kernel,
        out_shape=jax.ShapeDtypeStruct((V, E), jnp.float32),
        in_specs=[_VMEM] * 5,
        out_specs=_VMEM,
    )(adj_n.astype(jnp.bfloat16),
      w1.astype(jnp.bfloat16), b1,
      w2.astype(jnp.bfloat16), b2)


# =============================================================================
# Host-side glue (matches GCN.__init__ / GCN.normalize)
# =============================================================================
def normalize_adj(adj):
    """GCN.normalize(adj + I): row-normalize with 1/rowsum (inf -> 0)."""
    a = adj + jnp.eye(adj.shape[0], dtype=jnp.float32)
    rowsum = jnp.sum(a, axis=1, keepdims=True)
    r_inv = jnp.where(rowsum > 0.0, 1.0 / rowsum, 0.0)
    return a * r_inv


if __name__ == "__main__":
    key = jax.random.PRNGKey(0)
    k_adj, k_w1, k_b1, k_w2, k_b2 = jax.random.split(key, 5)

    # Symmetric binary co-occurrence graph, then normalized as in the module.
    raw = (jax.random.uniform(k_adj, (VOC, VOC)) > 0.9).astype(jnp.float32)
    raw = jnp.maximum(raw, raw.T)
    adj_n = normalize_adj(raw)

    # GraphConvolution.reset_parameters: uniform(-1/sqrt(out_dim), +1/sqrt(out_dim))
    stdv = EMB ** -0.5
    w1 = jax.random.uniform(k_w1, (VOC, EMB), jnp.float32, -stdv, stdv)
    b1 = jax.random.uniform(k_b1, (1, EMB), jnp.float32, -stdv, stdv)
    w2 = jax.random.uniform(k_w2, (EMB, EMB), jnp.float32, -stdv, stdv)
    b2 = jax.random.uniform(k_b2, (1, EMB), jnp.float32, -stdv, stdv)

    out = jax.block_until_ready(gcn_forward(adj_n, w1, b1, w2, b2))

    # f32 pure-JAX reference (eval mode: dropout identity)
    h1_ref = jnp.maximum(adj_n @ w1 + b1, 0.0)
    ref = adj_n @ (h1_ref @ w2) + b2

    assert out.shape == (VOC, EMB) and out.dtype == jnp.float32
    assert bool(jnp.all(jnp.isfinite(out)))
    assert bool(jnp.allclose(out, ref, rtol=2e-2, atol=2e-3))
    print("KERNEL_OK")
</pallas_src>

<mosaic_0001>
module attributes {stable_mosaic.version = 11 : i64} {
  func.func @gcn_kernel(%arg0: memref<128x128xbf16, #tpu.memory_space<vmem>>, %arg1: memref<128x64xbf16, #tpu.memory_space<vmem>>, %arg2: memref<1x64xf32, #tpu.memory_space<vmem>>, %arg3: memref<64x64xbf16, #tpu.memory_space<vmem>>, %arg4: memref<1x64xf32, #tpu.memory_space<vmem>>, %arg5: memref<128x64xf32, #tpu.memory_space<vmem>>) attributes {dimension_semantics = [], scalar_prefetch = 0 : i64, scratch_operands = 0 : i64, tpu.core_type = #tpu.core_type<tc>} {
    %c0 = arith.constant 0 : index
    %c0_0 = arith.constant 0 : index
    %0 = vector.load %arg0[%c0, %c0_0] : memref<128x128xbf16, #tpu.memory_space<vmem>>, vector<128x128xbf16>
    %c0_1 = arith.constant 0 : index
    %c0_2 = arith.constant 0 : index
    %1 = vector.load %arg1[%c0_1, %c0_2] : memref<128x64xbf16, #tpu.memory_space<vmem>>, vector<128x64xbf16>
    %cst = arith.constant dense<0.000000e+00> : vector<128x64xf32>
    %2 = tpu.matmul %0, %1, %cst {dimension_numbers = #tpu.dot_dimension_numbers<[1], [0], [0], [1], [0, 0, 1, 1], [], []>} : vector<128x128xbf16>, vector<128x64xbf16>, vector<128x64xf32> -> vector<128x64xf32>
    %c0_3 = arith.constant 0 : index
    %c0_4 = arith.constant 0 : index
    %3 = vector.load %arg2[%c0_3, %c0_4] : memref<1x64xf32, #tpu.memory_space<vmem>>, vector<1x64xf32>
    %4 = vector.broadcast %3 : vector<1x64xf32> to vector<128x64xf32>
    %5 = arith.addf %2, %4 : vector<128x64xf32>
    %cst_5 = arith.constant 0.000000e+00 : f32
    %6 = vector.broadcast %cst_5 : f32 to vector<128x64xf32>
    %7 = arith.maximumf %5, %6 : vector<128x64xf32>
    %8 = arith.truncf %7 : vector<128x64xf32> to vector<128x64xbf16>
    %c0_6 = arith.constant 0 : index
    %c0_7 = arith.constant 0 : index
    %9 = vector.load %arg3[%c0_6, %c0_7] : memref<64x64xbf16, #tpu.memory_space<vmem>>, vector<64x64xbf16>
    %cst_8 = arith.constant dense<0.000000e+00> : vector<128x64xf32>
    %10 = tpu.matmul %8, %9, %cst_8 {dimension_numbers = #tpu.dot_dimension_numbers<[1], [0], [0], [1], [0, 0, 1, 1], [], []>} : vector<128x64xbf16>, vector<64x64xbf16>, vector<128x64xf32> -> vector<128x64xf32>
    %11 = arith.truncf %10 : vector<128x64xf32> to vector<128x64xbf16>
    %cst_9 = arith.constant dense<0.000000e+00> : vector<128x64xf32>
    %12 = tpu.matmul %0, %11, %cst_9 {dimension_numbers = #tpu.dot_dimension_numbers<[1], [0], [0], [1], [0, 0, 1, 1], [], []>} : vector<128x128xbf16>, vector<128x64xbf16>, vector<128x64xf32> -> vector<128x64xf32>
    %c0_10 = arith.constant 0 : index
    %c0_11 = arith.constant 0 : index
    %13 = vector.load %arg4[%c0_10, %c0_11] : memref<1x64xf32, #tpu.memory_space<vmem>>, vector<1x64xf32>
    %14 = vector.broadcast %13 : vector<1x64xf32> to vector<128x64xf32>
    %15 = arith.addf %12, %14 : vector<128x64xf32>
    %c0_12 = arith.constant 0 : index
    %c0_13 = arith.constant 0 : index
    %16 = vector.load %arg5[%c0_12, %c0_13] : memref<128x64xf32, #tpu.memory_space<vmem>>, vector<128x64xf32>
    tpu.vector_store %arg5[%c0_12, %c0_13], %15 {strides = array<i32>} : memref<128x64xf32, #tpu.memory_space<vmem>>, vector<128x64xf32>,
    return
  }
}

</mosaic_0001>

<llo_original>
// kernel: tpu_custom_call.1
$region0: #{tpu_custom_call.1}
  #allocation0 [shape = 'u32[]', space=smem, size = 0x4, offset = 0x4, fixed_abs, tag = 'smem constant byte address 0x4 - core index']
  #allocation1 [shape = 'u32[144,128]{1,0:T(1,128)}', space=vmem, size = 0x12000, scoped, tag = 'internal scratch']
  %s0 = inlined_call_operand.vmem [shape: bf16[128,128], index: 0, kind: input, shape index: {}]
  %s1 = inlined_call_operand.vmem [shape: bf16[128,64], index: 1, kind: input, shape index: {}]
  %s2 = inlined_call_operand.vmem [shape: f32[1,64], index: 2, kind: input, shape index: {}]
  %s3 = inlined_call_operand.vmem [shape: bf16[64,64], index: 3, kind: input, shape index: {}]
  %s4 = inlined_call_operand.vmem [shape: f32[1,64], index: 4, kind: input, shape index: {}]
  %s5 = inlined_call_operand.vmem [shape: f32[128,64], index: 5, kind: output, shape index: {}]
  %s6 = sld [smem:[#allocation0]]
  $region30: #{tpu_custom_call.1} parent=0
    _
  %s8 = ssub.s32 1, %s6
  %s9 = scalar_select 0, %s8, %s6
  // Predicated region
  $region2: #{tpu_custom_call.1} parent=0 // pred_check
    _
  $region3: #{tpu_custom_call.1} parent=0 // pred_check_branch
    %11 = sbr.rel (0) target = $region5
  $region4: #{tpu_custom_call.1} parent=0 // pred_region
    _
  $region5: #{tpu_custom_call.1} parent=0 // pred_fallthru
    _
  // Predicated region
  $region6: #{tpu_custom_call.1} parent=0 // pred_check
    _
  $region7: #{tpu_custom_call.1} parent=0 // pred_check_branch
    %13 = sbr.rel (0) target = $region9
  $region8: #{tpu_custom_call.1} parent=0 // pred_region
    _
  $region9: #{tpu_custom_call.1} parent=0 // pred_fallthru
    _
  // Predicated region
  $region10: #{tpu_custom_call.1} parent=0 // pred_check
    _
  $region11: #{tpu_custom_call.1} parent=0 // pred_check_branch
    %15 = sbr.rel (0) target = $region13
  $region12: #{tpu_custom_call.1} parent=0 // pred_region
    _
  $region13: #{tpu_custom_call.1} parent=0 // pred_fallthru
    _
  // Predicated region
  $region14: #{tpu_custom_call.1} parent=0 // pred_check
    _
  $region15: #{tpu_custom_call.1} parent=0 // pred_check_branch
    %17 = sbr.rel (0) target = $region17
  $region16: #{tpu_custom_call.1} parent=0 // pred_region
    _
  $region17: #{tpu_custom_call.1} parent=0 // pred_fallthru
    _
  // Predicated region
  $region18: #{tpu_custom_call.1} parent=0 // pred_check
    _
  $region19: #{tpu_custom_call.1} parent=0 // pred_check_branch
    %19 = sbr.rel (0) target = $region21
  $region20: #{tpu_custom_call.1} parent=0 // pred_region
    _
  $region21: #{tpu_custom_call.1} parent=0 // pred_fallthru
    _
  %v21 = vld [vmem:[%s0] sm:$0xf]
  %v22 = vld [vmem:[%s0 + $0x4] sm:$0xf]
  %v23 = vld [vmem:[%s0 + $0x8] sm:$0xf]
  %v24 = vld [vmem:[%s0 + $0xc] sm:$0xf]
  %v25 = vld [vmem:[%s0 + $0x10] sm:$0xf]
  %v26 = vld [vmem:[%s0 + $0x14] sm:$0xf]
  %v27 = vld [vmem:[%s0 + $0x18] sm:$0xf]
  %v28 = vld [vmem:[%s0 + $0x1c] sm:$0xf]
  %v29 = vld [vmem:[%s0 + $0x20] sm:$0xf]
  %v30 = vld [vmem:[%s0 + $0x24] sm:$0xf]
  %v31 = vld [vmem:[%s0 + $0x28] sm:$0xf]
  %v32 = vld [vmem:[%s0 + $0x2c] sm:$0xf]
  %v33 = vld [vmem:[%s0 + $0x30] sm:$0xf]
  %v34 = vld [vmem:[%s0 + $0x34] sm:$0xf]
  %v35 = vld [vmem:[%s0 + $0x38] sm:$0xf]
  %v36 = vld [vmem:[%s0 + $0x3c] sm:$0xf]
  %v37 = vld [vmem:[%s1] sm:$0xf]
  %v38 = vld [vmem:[%s1 + $0x4] sm:$0xf]
  %v39 = vld [vmem:[%s1 + $0x8] sm:$0xf]
  %v40 = vld [vmem:[%s1 + $0xc] sm:$0xf]
  %v41 = vld [vmem:[%s1 + $0x10] sm:$0xf]
  %v42 = vld [vmem:[%s1 + $0x14] sm:$0xf]
  %v43 = vld [vmem:[%s1 + $0x18] sm:$0xf]
  %v44 = vld [vmem:[%s1 + $0x1c] sm:$0xf]
  %v45 = vld [vmem:[%s1 + $0x20] sm:$0xf]
  %v46 = vld [vmem:[%s1 + $0x24] sm:$0xf]
  %v47 = vld [vmem:[%s1 + $0x28] sm:$0xf]
  %v48 = vld [vmem:[%s1 + $0x2c] sm:$0xf]
  %v49 = vld [vmem:[%s1 + $0x30] sm:$0xf]
  %v50 = vld [vmem:[%s1 + $0x34] sm:$0xf]
  %v51 = vld [vmem:[%s1 + $0x38] sm:$0xf]
  %v52 = vld [vmem:[%s1 + $0x3c] sm:$0xf]
  %v53 = vld [vmem:[%s2] sm:$0x1]
  %v55 = vlaneseq
  %v56 = vshrl.u32 %v55, 7
  %v57 = vsub.s32 0, %v56
  %v58 = vrot.slane %v53, %v57
  %v76 = vunpack.c.l.b16 %v21
  %v77 = vunpack.c.l.b16 %v22
  %v78 = vunpack.c.l.b16 %v23
  %v79 = vunpack.c.l.b16 %v24
  %v80 = vunpack.c.l.b16 %v25
  %v81 = vunpack.c.l.b16 %v26
  %v82 = vunpack.c.l.b16 %v27
  %v83 = vunpack.c.l.b16 %v28
  %v84 = vunpack.c.l.b16 %v29
  %v85 = vunpack.c.l.b16 %v30
  %v86 = vunpack.c.l.b16 %v31
  %v87 = vunpack.c.l.b16 %v32
  %v88 = vunpack.c.l.b16 %v33
  %v89 = vunpack.c.l.b16 %v34
  %v90 = vunpack.c.l.b16 %v35
  %v91 = vunpack.c.l.b16 %v36
  %v92 = vpack.c.b16 %v77, %v76
  %v93 = vpack.c.b16 %v79, %v78
  %v94 = vpack.c.b16 %v81, %v80
  %v95 = vpack.c.b16 %v83, %v82
  %v96 = vpack.c.b16 %v85, %v84
  %v97 = vpack.c.b16 %v87, %v86
  %v98 = vpack.c.b16 %v89, %v88
  %v99 = vpack.c.b16 %v91, %v90
  %v124 = vunpack.c.l.b16 %v37
  %v125 = vunpack.c.l.b16 %v38
  %v126 = vunpack.c.l.b16 %v39
  %v127 = vunpack.c.l.b16 %v40
  %v128 = vunpack.c.l.b16 %v41
  %v129 = vunpack.c.l.b16 %v42
  %v130 = vunpack.c.l.b16 %v43
  %v131 = vunpack.c.l.b16 %v44
  %v132 = vunpack.c.l.b16 %v45
  %v133 = vunpack.c.l.b16 %v46
  %v134 = vunpack.c.l.b16 %v47
  %v135 = vunpack.c.l.b16 %v48
  %v136 = vunpack.c.l.b16 %v49
  %v137 = vunpack.c.l.b16 %v50
  %v138 = vunpack.c.l.b16 %v51
  %v139 = vunpack.c.l.b16 %v52
  %v140 = vpack.c.b16 %v125, %v124
  %v141 = vpack.c.b16 %v127, %v126
  %v142 = vpack.c.b16 %v129, %v128
  %v143 = vpack.c.b16 %v131, %v130
  %v144 = vpack.c.b16 %v133, %v132
  %v145 = vpack.c.b16 %v135, %v134
  %v146 = vpack.c.b16 %v137, %v136
  %v147 = vpack.c.b16 %v139, %v138
  %156 = vmatprep.subr.bf16.mxu0 0
  %157 = vmatpush1.bf16.msra.mxu0 %v140
  %158 = vmatprep.subr.bf16.mxu0 0
  %159 = vmatpush1.bf16.msra.mxu0 %v141
  %160 = vmatprep.subr.bf16.mxu0 0
  %161 = vmatpush1.bf16.msra.mxu0 %v142
  %162 = vmatprep.subr.bf16.mxu0 0
  %163 = vmatpush1.bf16.msra.mxu0 %v143
  %164 = vmatprep.subr.bf16.mxu0 0
  %165 = vmatpush1.bf16.msra.mxu0 %v144
  %166 = vmatprep.subr.bf16.mxu0 0
  %167 = vmatpush1.bf16.msra.mxu0 %v145
  %168 = vmatprep.subr.bf16.mxu0 0
  %169 = vmatpush1.bf16.msra.mxu0 %v146
  %170 = vmatprep.subr.bf16.mxu0 0
  %171 = vmatpush1.bf16.msra.mxu0 %v147
  %172 = vmatprep.subr.bf16.mxu0 0
  %173 = vmatpush1.bf16.msra.mxu0 0
  %174 = vmatprep.subr.bf16.mxu0 0
  %175 = vmatpush1.bf16.msra.mxu0 0
  %176 = vmatprep.subr.bf16.mxu0 0
  %177 = vmatpush1.bf16.msra.mxu0 0
  %178 = vmatprep.subr.bf16.mxu0 0
  %179 = vmatpush1.bf16.msra.mxu0 0
  %180 = vmatprep.subr.bf16.mxu0 0
  %181 = vmatpush1.bf16.msra.mxu0 0
  %182 = vmatprep.subr.bf16.mxu0 0
  %183 = vmatpush1.bf16.msra.mxu0 0
  %184 = vmatprep.subr.bf16.mxu0 0
  %185 = vmatpush1.bf16.msra.mxu0 0
  %186 = vmatprep.subr.bf16.mxu0 0
  %187 = vmatpush1.bf16.msra.mxu0 0
  %188 = vmatprep.mubr.bf16.mxu0 0
  %189 = vmatmul.mubr.bf16.gmra.mrb[0].mxu0 %v92
  %v190 = vpop.f32.mrb[0].mxu0
  %v191 = vadd.f32 %v58, %v190
  %v192 = vpop.f32.mrb[0].mxu0
  %v193 = vpop.f32.mrb[0].mxu0
  %v194 = vadd.f32 %v58, %v193
  %v195 = vpop.f32.mrb[0].mxu0
  %196 = vmatprep.mubr.bf16.mxu0 0
  %197 = vmatmul.mubr.bf16.gmra.mrb[0].mxu0 %v93
  %v198 = vpop.f32.mrb[0].mxu0
  %v199 = vadd.f32 %v58, %v198
  %v200 = vpop.f32.mrb[0].mxu0
  %v201 = vpop.f32.mrb[0].mxu0
  %v202 = vadd.f32 %v58, %v201
  %v203 = vpop.f32.mrb[0].mxu0
  %204 = vmatprep.mubr.bf16.mxu0 0
  %205 = vmatmul.mubr.bf16.gmra.mrb[0].mxu0 %v94
  %v206 = vpop.f32.mrb[0].mxu0
  %v207 = vadd.f32 %v58, %v206
  %v208 = vpop.f32.mrb[0].mxu0
  %v209 = vpop.f32.mrb[0].mxu0
  %v210 = vadd.f32 %v58, %v209
  %v211 = vpop.f32.mrb[0].mxu0
  %212 = vmatprep.mubr.bf16.mxu0 0
  %213 = vmatmul.mubr.bf16.gmra.mrb[0].mxu0 %v95
  %v214 = vpop.f32.mrb[0].mxu0
  %v215 = vadd.f32 %v58, %v214
  %v216 = vpop.f32.mrb[0].mxu0
  %v217 = vpop.f32.mrb[0].mxu0
  %v218 = vadd.f32 %v58, %v217
  %v219 = vpop.f32.mrb[0].mxu0
  %220 = vmatprep.mubr.bf16.mxu0 0
  %221 = vmatmul.mubr.bf16.gmra.mrb[0].mxu0 %v96
  %v222 = vpop.f32.mrb[0].mxu0
  %v223 = vadd.f32 %v58, %v222
  %v224 = vpop.f32.mrb[0].mxu0
  %v225 = vpop.f32.mrb[0].mxu0
  %v226 = vadd.f32 %v58, %v225
  %v227 = vpop.f32.mrb[0].mxu0
  %228 = vmatprep.mubr.bf16.mxu0 0
  %229 = vmatmul.mubr.bf16.gmra.mrb[0].mxu0 %v97
  %v230 = vpop.f32.mrb[0].mxu0
  %v231 = vadd.f32 %v58, %v230
  %v232 = vpop.f32.mrb[0].mxu0
  %v233 = vpop.f32.mrb[0].mxu0
  %v234 = vadd.f32 %v58, %v233
  %v235 = vpop.f32.mrb[0].mxu0
  %236 = vmatprep.mubr.bf16.mxu0 0
  %237 = vmatmul.mubr.bf16.gmra.mrb[0].mxu0 %v98
  %v238 = vpop.f32.mrb[0].mxu0
  %v239 = vadd.f32 %v58, %v238
  %v240 = vpop.f32.mrb[0].mxu0
  %v241 = vpop.f32.mrb[0].mxu0
  %v242 = vadd.f32 %v58, %v241
  %v243 = vpop.f32.mrb[0].mxu0
  %244 = vmatprep.mubr.bf16.mxu0 0
  %245 = vmatmul.mubr.bf16.gmra.mrb[0].mxu0 %v99
  %v246 = vpop.f32.mrb[0].mxu0
  %v247 = vadd.f32 %v58, %v246
  %v248 = vpop.f32.mrb[0].mxu0
  %v249 = vpop.f32.mrb[0].mxu0
  %v250 = vadd.f32 %v58, %v249
  %v251 = vpop.f32.mrb[0].mxu0
  %252 = vdwg.mxu0
  %v253 = vmax.f32 %v191, 0.0
  %v254 = vmax.f32 %v194, 0.0
  %v255 = vmax.f32 %v199, 0.0
  %v256 = vmax.f32 %v202, 0.0
  %v257 = vmax.f32 %v207, 0.0
  %v258 = vmax.f32 %v210, 0.0
  %v259 = vmax.f32 %v215, 0.0
  %v260 = vmax.f32 %v218, 0.0
  %v261 = vmax.f32 %v223, 0.0
  %v262 = vmax.f32 %v226, 0.0
  %v263 = vmax.f32 %v231, 0.0
  %v264 = vmax.f32 %v234, 0.0
  %v265 = vmax.f32 %v239, 0.0
  %v266 = vmax.f32 %v242, 0.0
  %v267 = vmax.f32 %v247, 0.0
  %v268 = vmax.f32 %v250, 0.0
  %v269 = vpack.c.bf16 %v254, %v253
  %v270 = vpack.c.bf16 %v256, %v255
  %v271 = vpack.c.bf16 %v258, %v257
  %v272 = vpack.c.bf16 %v260, %v259
  %v273 = vpack.c.bf16 %v262, %v261
  %v274 = vpack.c.bf16 %v264, %v263
  %v275 = vpack.c.bf16 %v266, %v265
  %v276 = vpack.c.bf16 %v268, %v267
  %v277 = vld [vmem:[%s3] sm:$0xf]
  %v278 = vld [vmem:[%s3 + $0x4] sm:$0xf]
  %v279 = vld [vmem:[%s3 + $0x8] sm:$0xf]
  %v280 = vld [vmem:[%s3 + $0xc] sm:$0xf]
  %v281 = vld [vmem:[%s3 + $0x10] sm:$0xf]
  %v282 = vld [vmem:[%s3 + $0x14] sm:$0xf]
  %v283 = vld [vmem:[%s3 + $0x18] sm:$0xf]
  %v284 = vld [vmem:[%s3 + $0x1c] sm:$0xf]
  %v293 = vunpack.c.l.b16 %v277
  %v294 = vunpack.c.l.b16 %v278
  %v295 = vunpack.c.l.b16 %v279
  %v296 = vunpack.c.l.b16 %v280
  %v297 = vunpack.c.l.b16 %v281
  %v298 = vunpack.c.l.b16 %v282
  %v299 = vunpack.c.l.b16 %v283
  %v300 = vunpack.c.l.b16 %v284
  %v301 = vpack.c.b16 %v294, %v293
  %v302 = vpack.c.b16 %v296, %v295
  %v303 = vpack.c.b16 %v298, %v297
  %v304 = vpack.c.b16 %v300, %v299
  %vm309 = vcmask 523264
  %v311 = vsel %vm309, %v269, 0
  %v314 = vsel %vm309, %v270, 0
  %v317 = vsel %vm309, %v271, 0
  %v320 = vsel %vm309, %v272, 0
  %v323 = vsel %vm309, %v273, 0
  %v326 = vsel %vm309, %v274, 0
  %v329 = vsel %vm309, %v275, 0
  %v332 = vsel %vm309, %v276, 0
  %334 = vmatprep.subr.bf16.mxu0 0
  %335 = vmatpush1.bf16.msra.mxu0 %v301
  %336 = vmatprep.subr.bf16.mxu0 0
  %337 = vmatpush1.bf16.msra.mxu0 %v302
  %338 = vmatprep.subr.bf16.mxu0 0
  %339 = vmatpush1.bf16.msra.mxu0 %v303
  %340 = vmatprep.subr.bf16.mxu0 0
  %341 = vmatpush1.bf16.msra.mxu0 %v304
  %342 = vmatprep.subr.bf16.mxu0 0
  %343 = vmatpush1.bf16.msra.mxu0 0
  %344 = vmatprep.subr.bf16.mxu0 0
  %345 = vmatpush1.bf16.msra.mxu0 0
  %346 = vmatprep.subr.bf16.mxu0 0
  %347 = vmatpush1.bf16.msra.mxu0 0
  %348 = vmatprep.subr.bf16.mxu0 0
  %349 = vmatpush1.bf16.msra.mxu0 0
  %350 = vmatprep.subr.bf16.mxu0 0
  %351 = vmatpush1.bf16.msra.mxu0 0
  %352 = vmatprep.subr.bf16.mxu0 0
  %353 = vmatpush1.bf16.msra.mxu0 0
  %354 = vmatprep.subr.bf16.mxu0 0
  %355 = vmatpush1.bf16.msra.mxu0 0
  %356 = vmatprep.subr.bf16.mxu0 0
  %357 = vmatpush1.bf16.msra.mxu0 0
  %358 = vmatprep.subr.bf16.mxu0 0
  %359 = vmatpush1.bf16.msra.mxu0 0
  %360 = vmatprep.subr.bf16.mxu0 0
  %361 = vmatpush1.bf16.msra.mxu0 0
  %362 = vmatprep.subr.bf16.mxu0 0
  %363 = vmatpush1.bf16.msra.mxu0 0
  %364 = vmatprep.subr.bf16.mxu0 0
  %365 = vmatpush1.bf16.msra.mxu0 0
  %366 = vmatprep.mubr.bf16.mxu0 0
  %367 = vmatmul.mubr.bf16.gmra.mrb[0].mxu0 %v311
  %v368 = vpop.f32.mrb[0].mxu0
  %v369 = vadd.f32 0.0, %v368
  %v370 = vpop.f32.mrb[0].mxu0
  %v371 = vpop.f32.mrb[0].mxu0
  %v372 = vadd.f32 0.0, %v371
  %v373 = vpop.f32.mrb[0].mxu0
  %374 = vmatprep.mubr.bf16.mxu0 0
  %375 = vmatmul.mubr.bf16.gmra.mrb[0].mxu0 %v314
  %v376 = vpop.f32.mrb[0].mxu0
  %v377 = vadd.f32 0.0, %v376
  %v378 = vpop.f32.mrb[0].mxu0
  %v379 = vpop.f32.mrb[0].mxu0
  %v380 = vadd.f32 0.0, %v379
  %v381 = vpop.f32.mrb[0].mxu0
  %382 = vmatprep.mubr.bf16.mxu0 0
  %383 = vmatmul.mubr.bf16.gmra.mrb[0].mxu0 %v317
  %v384 = vpop.f32.mrb[0].mxu0
  %v385 = vadd.f32 0.0, %v384
  %v386 = vpop.f32.mrb[0].mxu0
  %v387 = vpop.f32.mrb[0].mxu0
  %v388 = vadd.f32 0.0, %v387
  %v389 = vpop.f32.mrb[0].mxu0
  %390 = vmatprep.mubr.bf16.mxu0 0
  %391 = vmatmul.mubr.bf16.gmra.mrb[0].mxu0 %v320
  %v392 = vpop.f32.mrb[0].mxu0
  %v393 = vadd.f32 0.0, %v392
  %v394 = vpop.f32.mrb[0].mxu0
  %v395 = vpop.f32.mrb[0].mxu0
  %v396 = vadd.f32 0.0, %v395
  %v397 = vpop.f32.mrb[0].mxu0
  %398 = vmatprep.mubr.bf16.mxu0 0
  %399 = vmatmul.mubr.bf16.gmra.mrb[0].mxu0 %v323
  %v400 = vpop.f32.mrb[0].mxu0
  %v401 = vadd.f32 0.0, %v400
  %v402 = vpop.f32.mrb[0].mxu0
  %v403 = vpop.f32.mrb[0].mxu0
  %v404 = vadd.f32 0.0, %v403
  %v405 = vpop.f32.mrb[0].mxu0
  %406 = vmatprep.mubr.bf16.mxu0 0
  %407 = vmatmul.mubr.bf16.gmra.mrb[0].mxu0 %v326
  %v408 = vpop.f32.mrb[0].mxu0
  %v409 = vadd.f32 0.0, %v408
  %v410 = vpop.f32.mrb[0].mxu0
  %v411 = vpop.f32.mrb[0].mxu0
  %v412 = vadd.f32 0.0, %v411
  %v413 = vpop.f32.mrb[0].mxu0
  %414 = vmatprep.mubr.bf16.mxu0 0
  %415 = vmatmul.mubr.bf16.gmra.mrb[0].mxu0 %v329
  %v416 = vpop.f32.mrb[0].mxu0
  %v417 = vadd.f32 0.0, %v416
  %v418 = vpop.f32.mrb[0].mxu0
  %v419 = vpop.f32.mrb[0].mxu0
  %v420 = vadd.f32 0.0, %v419
  %v421 = vpop.f32.mrb[0].mxu0
  %422 = vmatprep.mubr.bf16.mxu0 0
  %423 = vmatmul.mubr.bf16.gmra.mrb[0].mxu0 %v332
  %v424 = vpop.f32.mrb[0].mxu0
  %v425 = vadd.f32 0.0, %v424
  %v426 = vpop.f32.mrb[0].mxu0
  %v427 = vpop.f32.mrb[0].mxu0
  %v428 = vadd.f32 0.0, %v427
  %v429 = vpop.f32.mrb[0].mxu0
  %430 = vdwg.mxu0
  %v431 = vpack.c.bf16 %v372, %v369
  %v432 = vpack.c.bf16 %v380, %v377
  %v433 = vpack.c.bf16 %v388, %v385
  %v434 = vpack.c.bf16 %v396, %v393
  %v435 = vpack.c.bf16 %v404, %v401
  %v436 = vpack.c.bf16 %v412, %v409
  %v437 = vpack.c.bf16 %v420, %v417
  %v438 = vpack.c.bf16 %v428, %v425
  %v439 = vld [vmem:[%s4] sm:$0x1]
  %v441 = vlaneseq
  %v442 = vshrl.u32 %v441, 7
  %v443 = vsub.s32 0, %v442
  %v444 = vrot.slane %v439, %v443
  %446 = vmatprep.subr.bf16.mxu0 0
  %447 = vmatpush1.bf16.msra.mxu0 %v431
  %448 = vmatprep.subr.bf16.mxu0 0
  %449 = vmatpush1.bf16.msra.mxu0 %v432
  %450 = vmatprep.subr.bf16.mxu0 0
  %451 = vmatpush1.bf16.msra.mxu0 %v433
  %452 = vmatprep.subr.bf16.mxu0 0
  %453 = vmatpush1.bf16.msra.mxu0 %v434
  %454 = vmatprep.subr.bf16.mxu0 0
  %455 = vmatpush1.bf16.msra.mxu0 %v435
  %456 = vmatprep.subr.bf16.mxu0 0
  %457 = vmatpush1.bf16.msra.mxu0 %v436
  %458 = vmatprep.subr.bf16.mxu0 0
  %459 = vmatpush1.bf16.msra.mxu0 %v437
  %460 = vmatprep.subr.bf16.mxu0 0
  %461 = vmatpush1.bf16.msra.mxu0 %v438
  %462 = vmatprep.subr.bf16.mxu0 0
  %463 = vmatpush1.bf16.msra.mxu0 0
  %464 = vmatprep.subr.bf16.mxu0 0
  %465 = vmatpush1.bf16.msra.mxu0 0
  %466 = vmatprep.subr.bf16.mxu0 0
  %467 = vmatpush1.bf16.msra.mxu0 0
  %468 = vmatprep.subr.bf16.mxu0 0
  %469 = vmatpush1.bf16.msra.mxu0 0
  %470 = vmatprep.subr.bf16.mxu0 0
  %471 = vmatpush1.bf16.msra.mxu0 0
  %472 = vmatprep.subr.bf16.mxu0 0
  %473 = vmatpush1.bf16.msra.mxu0 0
  %474 = vmatprep.subr.bf16.mxu0 0
  %475 = vmatpush1.bf16.msra.mxu0 0
  %476 = vmatprep.subr.bf16.mxu0 0
  %477 = vmatpush1.bf16.msra.mxu0 0
  %478 = vmatprep.mubr.bf16.mxu0 0
  %479 = vmatmul.mubr.bf16.gmra.mrb[0].mxu0 %v92
  %v480 = vpop.f32.mrb[0].mxu0
  %v481 = vadd.f32 %v444, %v480
  %v482 = vpop.f32.mrb[0].mxu0
  %v483 = vpop.f32.mrb[0].mxu0
  %v484 = vadd.f32 %v444, %v483
  %v485 = vpop.f32.mrb[0].mxu0
  %486 = vmatprep.mubr.bf16.mxu0 0
  %487 = vmatmul.mubr.bf16.gmra.mrb[0].mxu0 %v93
  %v488 = vpop.f32.mrb[0].mxu0
  %v489 = vadd.f32 %v444, %v488
  %v490 = vpop.f32.mrb[0].mxu0
  %v491 = vpop.f32.mrb[0].mxu0
  %v492 = vadd.f32 %v444, %v491
  %v493 = vpop.f32.mrb[0].mxu0
  %494 = vmatprep.mubr.bf16.mxu0 0
  %495 = vmatmul.mubr.bf16.gmra.mrb[0].mxu0 %v94
  %v496 = vpop.f32.mrb[0].mxu0
  %v497 = vadd.f32 %v444, %v496
  %v498 = vpop.f32.mrb[0].mxu0
  %v499 = vpop.f32.mrb[0].mxu0
  %v500 = vadd.f32 %v444, %v499
  %v501 = vpop.f32.mrb[0].mxu0
  %502 = vmatprep.mubr.bf16.mxu0 0
  %503 = vmatmul.mubr.bf16.gmra.mrb[0].mxu0 %v95
  %v504 = vpop.f32.mrb[0].mxu0
  %v505 = vadd.f32 %v444, %v504
  %v506 = vpop.f32.mrb[0].mxu0
  %v507 = vpop.f32.mrb[0].mxu0
  %v508 = vadd.f32 %v444, %v507
  %v509 = vpop.f32.mrb[0].mxu0
  %510 = vmatprep.mubr.bf16.mxu0 0
  %511 = vmatmul.mubr.bf16.gmra.mrb[0].mxu0 %v96
  %v512 = vpop.f32.mrb[0].mxu0
  %v513 = vadd.f32 %v444, %v512
  %v514 = vpop.f32.mrb[0].mxu0
  %v515 = vpop.f32.mrb[0].mxu0
  %v516 = vadd.f32 %v444, %v515
  %v517 = vpop.f32.mrb[0].mxu0
  %518 = vmatprep.mubr.bf16.mxu0 0
  %519 = vmatmul.mubr.bf16.gmra.mrb[0].mxu0 %v97
  %v520 = vpop.f32.mrb[0].mxu0
  %v521 = vadd.f32 %v444, %v520
  %v522 = vpop.f32.mrb[0].mxu0
  %v523 = vpop.f32.mrb[0].mxu0
  %v524 = vadd.f32 %v444, %v523
  %v525 = vpop.f32.mrb[0].mxu0
  %526 = vmatprep.mubr.bf16.mxu0 0
  %527 = vmatmul.mubr.bf16.gmra.mrb[0].mxu0 %v98
  %v528 = vpop.f32.mrb[0].mxu0
  %v529 = vadd.f32 %v444, %v528
  %v530 = vpop.f32.mrb[0].mxu0
  %v531 = vpop.f32.mrb[0].mxu0
  %v532 = vadd.f32 %v444, %v531
  %v533 = vpop.f32.mrb[0].mxu0
  %534 = vmatprep.mubr.bf16.mxu0 0
  %535 = vmatmul.mubr.bf16.gmra.mrb[0].mxu0 %v99
  %v536 = vpop.f32.mrb[0].mxu0
  %v537 = vadd.f32 %v444, %v536
  %v538 = vpop.f32.mrb[0].mxu0
  %v539 = vpop.f32.mrb[0].mxu0
  %v540 = vadd.f32 %v444, %v539
  %v541 = vpop.f32.mrb[0].mxu0
  %542 = vdwg.mxu0
  %543 = vst.msk [vmem:[%s5] sm:$0xff] %vm309, %v481
  %544 = vst.msk [vmem:[%s5 + $0x8] sm:$0xff] %vm309, %v484
  %545 = vst.msk [vmem:[%s5 + $0x10] sm:$0xff] %vm309, %v489
  %546 = vst.msk [vmem:[%s5 + $0x18] sm:$0xff] %vm309, %v492
  %547 = vst.msk [vmem:[%s5 + $0x20] sm:$0xff] %vm309, %v497
  %548 = vst.msk [vmem:[%s5 + $0x28] sm:$0xff] %vm309, %v500
  %549 = vst.msk [vmem:[%s5 + $0x30] sm:$0xff] %vm309, %v505
  %550 = vst.msk [vmem:[%s5 + $0x38] sm:$0xff] %vm309, %v508
  %551 = vst.msk [vmem:[%s5 + $0x40] sm:$0xff] %vm309, %v513
  %552 = vst.msk [vmem:[%s5 + $0x48] sm:$0xff] %vm309, %v516
  %553 = vst.msk [vmem:[%s5 + $0x50] sm:$0xff] %vm309, %v521
  %554 = vst.msk [vmem:[%s5 + $0x58] sm:$0xff] %vm309, %v524
  %555 = vst.msk [vmem:[%s5 + $0x60] sm:$0xff] %vm309, %v529
  %556 = vst.msk [vmem:[%s5 + $0x68] sm:$0xff] %vm309, %v532
  %557 = vst.msk [vmem:[%s5 + $0x70] sm:$0xff] %vm309, %v537
  %558 = vst.msk [vmem:[%s5 + $0x78] sm:$0xff] %vm309, %v540
  // Predicated region
  $region22: #{tpu_custom_call.1} parent=0 // pred_check
    _
  $region23: #{tpu_custom_call.1} parent=0 // pred_check_branch
    %560 = sbr.rel (0) target = $region25
  $region24: #{tpu_custom_call.1} parent=0 // pred_region
    _
  $region25: #{tpu_custom_call.1} parent=0 // pred_fallthru
    _
  // Predicated region
  $region26: #{tpu_custom_call.1} parent=0 // pred_check
    _
  $region27: #{tpu_custom_call.1} parent=0 // pred_check_branch
    %562 = sbr.rel (0) target = $region29
  $region28: #{tpu_custom_call.1} parent=0 // pred_region
    _
  $region29: #{tpu_custom_call.1} parent=0 // pred_fallthru
    _

</llo_original>
